<compile_context>
chip_gen: v7x
topology: tpu7x:2x2x1
jax: 0.10.0
libtpu: 0.0.40
codegen_flags: <defaults>
</compile_context>

<pallas_src>
import jax
import jax.numpy as jnp
from jax.experimental import pallas as pl
from jax.experimental.pallas import tpu as pltpu

# ----------------------------- config -----------------------------
B = 16             # batch for the demo run
C = 4              # input channels
H = W = 16         # spatial
FEATURE_DIM = 128
ATTR_DIM = 55
NUM_ID = 32
OUT_LANES = 128    # lane-dense output slab width
BN_EPS = 1e-5
LEAKY_SLOPE = 0.01
MAX_TILE_B = 256   # rows per grid step for large batches (v6e/v7x MXU pass)
WEIGHT_DTYPE = jnp.bfloat16   # cast after all folding; biases stay f32


# ----------------------------- kernel -----------------------------
def osnet_kernel(x_ref, w01_ref, wh_ref, wida_ref, bias_ref, out_ref):
    f32 = jnp.float32
    wd = w01_ref.dtype

    x = x_ref[...]                                   # (TILE_B, C, H*W) f32
    b01 = bias_ref[0:1, :]                           # folded bias for f   (1, 128)
    bh = bias_ref[1:2, :]                            # ba in 0:55, bid 55:87

    # GAP (lane reduce on XLU) + folded backbone/linear/BN matmul
    # (1/HW scale is folded into w01 at param-prep).
    s = jnp.sum(x, axis=-1)                          # (TILE_B, C)
    f = jnp.dot(s.astype(wd), w01_ref[...],
                preferred_element_type=f32) + b01    # (TILE_B, 128)
    f = jnp.where(f >= 0.0, f, LEAKY_SLOPE * f)      # LeakyReLU

    # fused heads, lane order: [attr logits 0:55 | id feature logits 55:87 | 0]
    heads = jnp.dot(f.astype(wd), wh_ref[...],
                    preferred_element_type=f32) + bh  # (TILE_B, 128)

    lane = jax.lax.broadcasted_iota(jnp.int32, heads.shape, 1)
    attr_mask = lane < ATTR_DIM
    id_mask = jnp.logical_and(lane >= ATTR_DIM, lane < ATTR_DIM + NUM_ID)

    # attribute softmax over lanes 0:55 (full-width lane masks, no sub-vreg slices)
    m_a = jnp.max(jnp.where(attr_mask, heads, -jnp.inf), axis=-1, keepdims=True)
    e_a = jnp.where(attr_mask, jnp.exp(heads - m_a), 0.0)
    inv_a = pl.reciprocal(jnp.sum(e_a, axis=-1, keepdims=True), approx=True)
    attr_slab = e_a * inv_a                          # probs in 0:55, zero elsewhere

    # id logits: heads (feature part in 55:87) + out_attr @ attr-part of id_lin,
    # pre-padded so its 32 outputs land in lanes 55:87 -> lane-aligned add.
    id_slab = heads + jnp.dot(attr_slab.astype(wd), wida_ref[...],
                              preferred_element_type=f32)
    m_i = jnp.max(jnp.where(id_mask, id_slab, -jnp.inf), axis=-1, keepdims=True)
    e_i = jnp.where(id_mask, jnp.exp(id_slab - m_i), 0.0)
    inv_i = pl.reciprocal(jnp.sum(e_i, axis=-1, keepdims=True), approx=True)
    id_probs = e_i * inv_i                           # probs in 55:87, zero elsewhere

    # lane-dense output slab [attr | id | 0] -> single unmasked 128-lane store
    out_ref[...] = (attr_slab + id_probs).astype(out_ref.dtype)


# ----------------------------- wrapper -----------------------------
def _round_up(n, m):
    return ((n + m - 1) // m) * m


def my_osnet_forward(x, kernel_inputs):
    """x: (B, C, H, W) float32. Returns (out_id, out_attr)."""
    b = x.shape[0]
    w01, wh, wida, bias_pack = kernel_inputs

    # Small batches: one grid step (TILE_B = padded B, multiple of 16 for bf16).
    # Large batches: up to 256 rows per step, "parallel" axis for megacore.
    tile_b = min(_round_up(b, 16), MAX_TILE_B)
    bp = _round_up(b, tile_b)

    x3d = x.reshape(b, C, H * W).astype(jnp.float32)
    if bp != b:
        x3d = jnp.pad(x3d, ((0, bp - b), (0, 0), (0, 0)))

    slab = pl.pallas_call(
        osnet_kernel,
        out_shape=jax.ShapeDtypeStruct((bp, OUT_LANES), jnp.float32),
        grid=(bp // tile_b,),
        in_specs=[
            pl.BlockSpec((tile_b, C, H * W), lambda i: (i, 0, 0)),
            pl.BlockSpec(w01.shape, lambda i: (0, 0)),   # weights: constant block,
            pl.BlockSpec(wh.shape, lambda i: (0, 0)),    # re-DMA skipped across steps
            pl.BlockSpec(wida.shape, lambda i: (0, 0)),
            pl.BlockSpec(bias_pack.shape, lambda i: (0, 0)),
        ],
        out_specs=pl.BlockSpec((tile_b, OUT_LANES), lambda i: (i, 0)),
        compiler_params=pltpu.CompilerParams(
            dimension_semantics=("parallel",)),
    )(x3d, w01, wh, wida, bias_pack)

    out_attr = slab[:b, :ATTR_DIM]
    out_id = slab[:b, ATTR_DIM:ATTR_DIM + NUM_ID]
    return out_id, out_attr


# ----------------------------- param prep -----------------------------
def _linear_params(key, fan_in, fan_out):
    """Deterministic PyTorch-style uniform init; weight stored (in, out)."""
    kw, kb = jax.random.split(key)
    bound = 1.0 / jnp.sqrt(jnp.float32(fan_in))
    w = jax.random.uniform(kw, (fan_in, fan_out), jnp.float32, -bound, bound)
    b = jax.random.uniform(kb, (1, fan_out), jnp.float32, -bound, bound)
    return w, b


def make_params(key):
    keys = jax.random.split(key, 4)
    wb, bb = _linear_params(keys[0], C, FEATURE_DIM)                    # backbone stand-in
    wl, bl = _linear_params(keys[1], FEATURE_DIM, FEATURE_DIM)          # self.linear
    wa, ba = _linear_params(keys[2], FEATURE_DIM, ATTR_DIM)             # self.attr_lin
    wid, bid = _linear_params(keys[3], FEATURE_DIM + ATTR_DIM, NUM_ID)  # self.id_lin
    return {
        "wb": wb, "bb": bb,
        "wl": wl, "bl": bl,
        "gamma": jnp.ones((1, FEATURE_DIM), jnp.float32),
        "beta": jnp.zeros((1, FEATURE_DIM), jnp.float32),
        "rmean": jnp.zeros((1, FEATURE_DIM), jnp.float32),
        "rvar": jnp.ones((1, FEATURE_DIM), jnp.float32),
        "wa": wa, "ba": ba,
        "wid_f": wid[:FEATURE_DIM, :],   # rows multiplying features
        "wid_a": wid[FEATURE_DIM:, :],   # rows multiplying out_attr
        "bid": bid,
    }


def prepare_kernel_inputs(p):
    """Fold/pack raw module params into the 4 weight-side kernel inputs."""
    # 1) fold eval-mode BatchNorm1d into self.linear
    scale = p["gamma"] * jax.lax.rsqrt(p["rvar"] + BN_EPS)           # (1, F)
    wlf = p["wl"] * scale                                            # (F, F)
    blf = (p["bl"] - p["rmean"]) * scale + p["beta"]                 # (1, F)
    # 2) fold GAP(1/HW) + backbone Linear(C->F) + (BN-folded) self.linear into
    #    ONE (C, F) weight / (1, F) bias (exact: LeakyReLU is first nonlinearity)
    w01 = (p["wb"] @ wlf) / float(H * W)                             # (C, F)
    b01 = p["bb"] @ wlf + blf                                        # (1, F)
    # 3) fused heads in lane order [attr 0:55 | id-feature 55:87 | 0]
    wh = jnp.zeros((FEATURE_DIM, OUT_LANES), jnp.float32)
    wh = wh.at[:, :ATTR_DIM].set(p["wa"])
    wh = wh.at[:, ATTR_DIM:ATTR_DIM + NUM_ID].set(p["wid_f"])
    # 4) attr-part of id_lin pre-padded so its 32 outputs land in lanes 55:87
    wida_pad = jnp.zeros((OUT_LANES, OUT_LANES), jnp.float32)
    wida_pad = wida_pad.at[:ATTR_DIM, ATTR_DIM:ATTR_DIM + NUM_ID].set(p["wid_a"])
    # 5) pack biases (stay f32; added after f32 MXU accumulation)
    bias_pack = jnp.zeros((8, OUT_LANES), jnp.float32)
    bias_pack = bias_pack.at[0, :FEATURE_DIM].set(b01[0])
    bias_pack = bias_pack.at[1, :ATTR_DIM].set(p["ba"][0])
    bias_pack = bias_pack.at[1, ATTR_DIM:ATTR_DIM + NUM_ID].set(p["bid"][0])

    wd = WEIGHT_DTYPE  # cast AFTER all folding
    return (w01.astype(wd), wh.astype(wd), wida_pad.astype(wd), bias_pack)


# ----------------------------- reference (plain JAX, per-layer) -----------------------------
def reference_forward(x, p):
    b = x.shape[0]
    gap = jnp.mean(x.reshape(b, C, H * W), axis=-1)
    feat = gap @ p["wb"] + p["bb"]
    f = feat @ p["wl"] + p["bl"]
    f = (f - p["rmean"]) * jax.lax.rsqrt(p["rvar"] + BN_EPS) * p["gamma"] + p["beta"]
    f = jnp.where(f >= 0.0, f, LEAKY_SLOPE * f)
    out_attr = jax.nn.softmax(f @ p["wa"] + p["ba"], axis=1)
    out_id = jax.nn.softmax(f @ p["wid_f"] + out_attr @ p["wid_a"] + p["bid"], axis=1)
    return out_id, out_attr


# ----------------------------- main -----------------------------
if __name__ == "__main__":
    key = jax.random.PRNGKey(0)
    kx, kp = jax.random.split(key)
    x = jax.random.normal(kx, (B, C, H, W), jnp.float32)
    params = make_params(kp)
    kernel_inputs = prepare_kernel_inputs(params)

    out_id, out_attr = my_osnet_forward(x, kernel_inputs)
    out_id, out_attr = jax.block_until_ready((out_id, out_attr))

    ref_id, ref_attr = reference_forward(x, params)
    assert out_id.shape == (B, NUM_ID) and out_attr.shape == (B, ATTR_DIM)
    # tolerance loosened for bf16 weights + approx reciprocal (probabilities)
    assert jnp.allclose(out_id, ref_id, atol=2e-3, rtol=2e-2)
    assert jnp.allclose(out_attr, ref_attr, atol=2e-3, rtol=2e-2)

    print("KERNEL_OK")
</pallas_src>

<mosaic_0001>
module attributes {stable_mosaic.version = 11 : i64} {
  func.func @osnet_kernel(%arg0: i32, %arg1: memref<16x4x256xf32, #tpu.memory_space<vmem>>, %arg2: memref<4x128xbf16, #tpu.memory_space<vmem>>, %arg3: memref<128x128xbf16, #tpu.memory_space<vmem>>, %arg4: memref<128x128xbf16, #tpu.memory_space<vmem>>, %arg5: memref<8x128xf32, #tpu.memory_space<vmem>>, %arg6: memref<16x128xf32, #tpu.memory_space<vmem>>) attributes {dimension_semantics = [#tpu.dimension_semantics<parallel>], iteration_bounds = array<i64: 1>, scalar_prefetch = 0 : i64, scratch_operands = 0 : i64, tpu.core_type = #tpu.core_type<tc>, window_params = [{transform_indices = @transform_0, window_bounds = array<i64: 16, 4, 256>}, {pipeline_mode = #tpu.pipeline_mode<synchronous>, transform_indices = @transform_1, window_bounds = array<i64: 4, 128>}, {pipeline_mode = #tpu.pipeline_mode<synchronous>, transform_indices = @transform_2, window_bounds = array<i64: 128, 128>}, {pipeline_mode = #tpu.pipeline_mode<synchronous>, transform_indices = @transform_3, window_bounds = array<i64: 128, 128>}, {pipeline_mode = #tpu.pipeline_mode<synchronous>, transform_indices = @transform_4, window_bounds = array<i64: 8, 128>}, {transform_indices = @transform_5, window_bounds = array<i64: 16, 128>}]} {
    %c0 = arith.constant 0 : index
    %c0_0 = arith.constant 0 : index
    %c0_1 = arith.constant 0 : index
    %0 = vector.load %arg1[%c0, %c0_0, %c0_1] : memref<16x4x256xf32, #tpu.memory_space<vmem>>, vector<16x4x256xf32>
    %c0_2 = arith.constant 0 : index
    %c0_3 = arith.constant 0 : index
    %1 = vector.load %arg5[%c0_2, %c0_3] : memref<8x128xf32, #tpu.memory_space<vmem>>, vector<1x128xf32>
    %c1 = arith.constant 1 : index
    %c0_4 = arith.constant 0 : index
    %2 = vector.load %arg5[%c1, %c0_4] : memref<8x128xf32, #tpu.memory_space<vmem>>, vector<1x128xf32>
    %cst = arith.constant dense<0.000000e+00> : vector<16x4xf32>
    %3 = vector.multi_reduction <add>, %0, %cst [2] : vector<16x4x256xf32> to vector<16x4xf32>
    %4 = arith.truncf %3 : vector<16x4xf32> to vector<16x4xbf16>
    %c0_5 = arith.constant 0 : index
    %c0_6 = arith.constant 0 : index
    %5 = vector.load %arg2[%c0_5, %c0_6] : memref<4x128xbf16, #tpu.memory_space<vmem>>, vector<4x128xbf16>
    %cst_7 = arith.constant dense<0.000000e+00> : vector<16x128xf32>
    %6 = tpu.matmul %4, %5, %cst_7 {dimension_numbers = #tpu.dot_dimension_numbers<[1], [0], [0], [1], [0, 0, 1, 1], [], []>} : vector<16x4xbf16>, vector<4x128xbf16>, vector<16x128xf32> -> vector<16x128xf32>
    %7 = vector.broadcast %1 : vector<1x128xf32> to vector<16x128xf32>
    %8 = arith.addf %6, %7 : vector<16x128xf32>
    %cst_8 = arith.constant 0.000000e+00 : f32
    %9 = vector.broadcast %cst_8 : f32 to vector<16x128xf32>
    %10 = arith.cmpf oge, %8, %9 : vector<16x128xf32>
    %cst_9 = arith.constant 0.00999999977 : f32
    %11 = vector.broadcast %cst_9 : f32 to vector<16x128xf32>
    %12 = arith.mulf %11, %8 : vector<16x128xf32>
    %13 = arith.select %10, %8, %12 : vector<16x128xi1>, vector<16x128xf32>
    %14 = arith.truncf %13 : vector<16x128xf32> to vector<16x128xbf16>
    %c0_10 = arith.constant 0 : index
    %c0_11 = arith.constant 0 : index
    %15 = vector.load %arg3[%c0_10, %c0_11] : memref<128x128xbf16, #tpu.memory_space<vmem>>, vector<128x128xbf16>
    %cst_12 = arith.constant dense<0.000000e+00> : vector<16x128xf32>
    %16 = tpu.matmul %14, %15, %cst_12 {dimension_numbers = #tpu.dot_dimension_numbers<[1], [0], [0], [1], [0, 0, 1, 1], [], []>} : vector<16x128xbf16>, vector<128x128xbf16>, vector<16x128xf32> -> vector<16x128xf32>
    %17 = vector.broadcast %2 : vector<1x128xf32> to vector<16x128xf32>
    %18 = arith.addf %16, %17 : vector<16x128xf32>
    %19 = tpu.iota {dimensions = array<i32: 1>} : vector<16x128xi32>
    %c55_i32 = arith.constant 55 : i32
    %20 = vector.broadcast %c55_i32 : i32 to vector<16x128xi32>
    %21 = arith.cmpi slt, %19, %20 : vector<16x128xi32>
    %c55_i32_13 = arith.constant 55 : i32
    %22 = vector.broadcast %c55_i32_13 : i32 to vector<16x128xi32>
    %23 = arith.cmpi sge, %19, %22 : vector<16x128xi32>
    %c87_i32 = arith.constant 87 : i32
    %24 = vector.broadcast %c87_i32 : i32 to vector<16x128xi32>
    %25 = arith.cmpi slt, %19, %24 : vector<16x128xi32>
    %26 = arith.andi %23, %25 : vector<16x128xi1>
    %cst_14 = arith.constant 0xFF800000 : f32
    %27 = vector.broadcast %cst_14 : f32 to vector<16x128xf32>
    %28 = arith.select %21, %18, %27 : vector<16x128xi1>, vector<16x128xf32>
    %cst_15 = arith.constant dense<0xFF800000> : vector<16xf32>
    %29 = vector.multi_reduction <maximumf>, %28, %cst_15 [1] : vector<16x128xf32> to vector<16xf32>
    %30 = vector.shape_cast %29 : vector<16xf32> to vector<16x1xf32>
    %31 = vector.broadcast %30 : vector<16x1xf32> to vector<16x128xf32>
    %32 = arith.subf %18, %31 : vector<16x128xf32>
    %33 = math.exp %32 : vector<16x128xf32>
    %cst_16 = arith.constant 0.000000e+00 : f32
    %34 = vector.broadcast %cst_16 : f32 to vector<16x128xf32>
    %35 = arith.select %21, %33, %34 : vector<16x128xi1>, vector<16x128xf32>
    %cst_17 = arith.constant dense<0.000000e+00> : vector<16xf32>
    %36 = vector.multi_reduction <add>, %35, %cst_17 [1] : vector<16x128xf32> to vector<16xf32>
    %37 = vector.shape_cast %36 : vector<16xf32> to vector<16x1xf32>
    %38 = tpu.reciprocal %37 {approx = true} : vector<16x1xf32> -> vector<16x1xf32>
    %39 = vector.broadcast %38 : vector<16x1xf32> to vector<16x128xf32>
    %40 = arith.mulf %35, %39 : vector<16x128xf32>
    %41 = arith.truncf %40 : vector<16x128xf32> to vector<16x128xbf16>
    %c0_18 = arith.constant 0 : index
    %c0_19 = arith.constant 0 : index
    %42 = vector.load %arg4[%c0_18, %c0_19] : memref<128x128xbf16, #tpu.memory_space<vmem>>, vector<128x128xbf16>
    %cst_20 = arith.constant dense<0.000000e+00> : vector<16x128xf32>
    %43 = tpu.matmul %41, %42, %cst_20 {dimension_numbers = #tpu.dot_dimension_numbers<[1], [0], [0], [1], [0, 0, 1, 1], [], []>} : vector<16x128xbf16>, vector<128x128xbf16>, vector<16x128xf32> -> vector<16x128xf32>
    %44 = arith.addf %18, %43 : vector<16x128xf32>
    %cst_21 = arith.constant 0xFF800000 : f32
    %45 = vector.broadcast %cst_21 : f32 to vector<16x128xf32>
    %46 = arith.select %26, %44, %45 : vector<16x128xi1>, vector<16x128xf32>
    %cst_22 = arith.constant dense<0xFF800000> : vector<16xf32>
    %47 = vector.multi_reduction <maximumf>, %46, %cst_22 [1] : vector<16x128xf32> to vector<16xf32>
    %48 = vector.shape_cast %47 : vector<16xf32> to vector<16x1xf32>
    %49 = vector.broadcast %48 : vector<16x1xf32> to vector<16x128xf32>
    %50 = arith.subf %44, %49 : vector<16x128xf32>
    %51 = math.exp %50 : vector<16x128xf32>
    %cst_23 = arith.constant 0.000000e+00 : f32
    %52 = vector.broadcast %cst_23 : f32 to vector<16x128xf32>
    %53 = arith.select %26, %51, %52 : vector<16x128xi1>, vector<16x128xf32>
    %cst_24 = arith.constant dense<0.000000e+00> : vector<16xf32>
    %54 = vector.multi_reduction <add>, %53, %cst_24 [1] : vector<16x128xf32> to vector<16xf32>
    %55 = vector.shape_cast %54 : vector<16xf32> to vector<16x1xf32>
    %56 = tpu.reciprocal %55 {approx = true} : vector<16x1xf32> -> vector<16x1xf32>
    %57 = vector.broadcast %56 : vector<16x1xf32> to vector<16x128xf32>
    %58 = arith.mulf %53, %57 : vector<16x128xf32>
    %59 = arith.addf %40, %58 : vector<16x128xf32>
    %c0_25 = arith.constant 0 : index
    %c0_26 = arith.constant 0 : index
    %60 = vector.load %arg6[%c0_25, %c0_26] : memref<16x128xf32, #tpu.memory_space<vmem>>, vector<16x128xf32>
    tpu.vector_store %arg6[%c0_25, %c0_26], %59 {strides = array<i32>} : memref<16x128xf32, #tpu.memory_space<vmem>>, vector<16x128xf32>,
    return
  }
  func.func @transform_0(%arg0: i32) -> (i32, i32, i32) {
    %c0_i32 = arith.constant 0 : i32
    %c0_i32_0 = arith.constant 0 : i32
    %c0_i32_1 = arith.constant 0 : i32
    return %arg0, %c0_i32, %c0_i32_0 : i32, i32, i32
  }
  func.func @transform_1(%arg0: i32) -> (i32, i32) {
    %c0_i32 = arith.constant 0 : i32
    %c0_i32_0 = arith.constant 0 : i32
    %c0_i32_1 = arith.constant 0 : i32
    return %c0_i32, %c0_i32_0 : i32, i32
  }
  func.func @transform_2(%arg0: i32) -> (i32, i32) {
    %c0_i32 = arith.constant 0 : i32
    %c0_i32_0 = arith.constant 0 : i32
    %c0_i32_1 = arith.constant 0 : i32
    return %c0_i32, %c0_i32_0 : i32, i32
  }
  func.func @transform_3(%arg0: i32) -> (i32, i32) {
    %c0_i32 = arith.constant 0 : i32
    %c0_i32_0 = arith.constant 0 : i32
    %c0_i32_1 = arith.constant 0 : i32
    return %c0_i32, %c0_i32_0 : i32, i32
  }
  func.func @transform_4(%arg0: i32) -> (i32, i32) {
    %c0_i32 = arith.constant 0 : i32
    %c0_i32_0 = arith.constant 0 : i32
    %c0_i32_1 = arith.constant 0 : i32
    return %c0_i32, %c0_i32_0 : i32, i32
  }
  func.func @transform_5(%arg0: i32) -> (i32, i32) {
    %c0_i32 = arith.constant 0 : i32
    %c0_i32_0 = arith.constant 0 : i32
    return %arg0, %c0_i32 : i32, i32
  }
}

</mosaic_0001>

<llo_original>
// kernel: tpu_custom_call.1
$region0: #{tpu_custom_call.1}
  #allocation0 [shape = 'u32[]', space=smem, size = 0x4, offset = 0x4, fixed_abs, tag = 'smem constant byte address 0x4 - core index']
  #allocation1 [shape = 'u32[144,128]{1,0:T(1,128)}', space=vmem, size = 0x12000, scoped, tag = 'internal scratch']
  %s0 = inlined_call_operand.hbm [shape: f32[16,4,256], index: 0, kind: input, shape index: {}]
  %s1 = inlined_call_operand.vmem [shape: bf16[4,128], index: 1, kind: input, shape index: {}]
  %s2 = inlined_call_operand.hbm [shape: bf16[128,128], index: 2, kind: input, shape index: {}]
  %s3 = inlined_call_operand.hbm [shape: bf16[128,128], index: 3, kind: input, shape index: {}]
  %s4 = inlined_call_operand.vmem [shape: f32[8,128], index: 4, kind: input, shape index: {}]
  %s5 = inlined_call_operand.hbm [shape: f32[16,128], index: 5, kind: output, shape index: {}]
  %s6 = sld [smem:[#allocation0]]
  $region42: #{tpu_custom_call.1} parent=0
    _
  %s8 = ssub.s32 1, %s6
  %s9 = scalar_select 0, %s8, %s6
  $region1: #{tpu_custom_call.1} parent=0
    #allocation2 [shape = 'u8[65536]{0}', space=vmem, size = 0x10000, scoped, tag = 'input window, operand 0, single buffered']
    #allocation3 [shape = 's32[1]{0}', space=sflag, size = 0x4, scoped, tag = 'scoped memory for tpu_custom_call.1']
    #allocation4 [shape = 's32[1]{0}', space=sflag, size = 0x4, scoped, tag = 'scoped memory for tpu_custom_call.1']
    #allocation5 [shape = 'u8[32768]{0}', space=vmem, size = 0x8000, scoped, tag = 'input window, operand 2, single buffered']
    #allocation6 [shape = 's32[1]{0}', space=sflag, size = 0x4, scoped, tag = 'scoped memory for tpu_custom_call.1']
    #allocation7 [shape = 'u8[32768]{0}', space=vmem, size = 0x8000, scoped, tag = 'input window, operand 3, single buffered']
    #allocation8 [shape = 'u8[8192]{0}', space=vmem, size = 0x2000, scoped, tag = 'output window, operand 0, single buffered']
    %10 = vsyncpa [#allocation3], 0
    %11 = vsyncpa [#allocation6], 0
    %12 = vsyncpa [#allocation4], 0
    // Predicated region
    $region2: #{tpu_custom_call.1} parent=1 // pred_check
      _
    $region3: #{tpu_custom_call.1} parent=1 // pred_check_branch
      %14 = sbr.rel (0) target = $region5
    $region4: #{tpu_custom_call.1} parent=1 // pred_region
      %s16 = ssub.s32 2048, 2048
      %17 = vsyncadd [#allocation3], %s16
      %s18 = sshll.u32 [#allocation2], 4
      %s19 = int_to_ptr.vmem [resolvable:$true] %s18
      %24 = dma.hbm_to_vmem [thread:$0]  %s0, 2048, %s19, [#allocation3], 128, 128, 8
    $region5: #{tpu_custom_call.1} parent=1 // pred_fallthru
      _
    // Predicated region
    $region6: #{tpu_custom_call.1} parent=1 // pred_check
      _
    $region7: #{tpu_custom_call.1} parent=1 // pred_check_branch
      %26 = sbr.rel (0) target = $region9
    $region8: #{tpu_custom_call.1} parent=1 // pred_region
      _
    $region9: #{tpu_custom_call.1} parent=1 // pred_fallthru
      _
    // Predicated region
    $region10: #{tpu_custom_call.1} parent=1 // pred_check
      _
    $region11: #{tpu_custom_call.1} parent=1 // pred_check_branch
      %28 = sbr.rel (0) target = $region13
    $region12: #{tpu_custom_call.1} parent=1 // pred_region
      %s30 = ssub.s32 1024, 1024
      %31 = vsyncadd [#allocation6], %s30
      %s32 = sshll.u32 [#allocation5], 4
      %s33 = int_to_ptr.vmem [resolvable:$true] %s32
      %38 = dma.hbm_to_vmem [thread:$0]  %s2, 1024, %s33, [#allocation6], 64, 64, 4
    $region13: #{tpu_custom_call.1} parent=1 // pred_fallthru
      _
    // Predicated region
    $region14: #{tpu_custom_call.1} parent=1 // pred_check
      _
    $region15: #{tpu_custom_call.1} parent=1 // pred_check_branch
      %40 = sbr.rel (0) target = $region17
    $region16: #{tpu_custom_call.1} parent=1 // pred_region
      %s42 = ssub.s32 1024, 1024
      %43 = vsyncadd [#allocation6], %s42
      %s44 = sshll.u32 [#allocation7], 4
      %s45 = int_to_ptr.vmem [resolvable:$true] %s44
      %50 = dma.hbm_to_vmem [thread:$0]  %s3, 1024, %s45, [#allocation6], 64, 64, 4
    $region17: #{tpu_custom_call.1} parent=1 // pred_fallthru
      _
    // Predicated region
    $region18: #{tpu_custom_call.1} parent=1 // pred_check
      _
    $region19: #{tpu_custom_call.1} parent=1 // pred_check_branch
      %52 = sbr.rel (0) target = $region21
    $region20: #{tpu_custom_call.1} parent=1 // pred_region
      _
    $region21: #{tpu_custom_call.1} parent=1 // pred_fallthru
      _
    // Predicated region
    $region22: #{tpu_custom_call.1} parent=1 // pred_check
      _
    $region23: #{tpu_custom_call.1} parent=1 // pred_check_branch
      %54 = sbr.rel (0) target = $region25
    $region24: #{tpu_custom_call.1} parent=1 // pred_region
      %55 = dma.done [#allocation3], 2048
    $region25: #{tpu_custom_call.1} parent=1 // pred_fallthru
      _
    // Predicated region
    $region26: #{tpu_custom_call.1} parent=1 // pred_check
      _
    $region27: #{tpu_custom_call.1} parent=1 // pred_check_branch
      %57 = sbr.rel (0) target = $region29
    $region28: #{tpu_custom_call.1} parent=1 // pred_region
      %58 = dma.done [#allocation6], 1024
    $region29: #{tpu_custom_call.1} parent=1 // pred_fallthru
      _
    // Predicated region
    $region30: #{tpu_custom_call.1} parent=1 // pred_check
      _
    $region31: #{tpu_custom_call.1} parent=1 // pred_check_branch
      %60 = sbr.rel (0) target = $region33
    $region32: #{tpu_custom_call.1} parent=1 // pred_region
      %61 = dma.done [#allocation6], 1024
    $region33: #{tpu_custom_call.1} parent=1 // pred_fallthru
      _
    %v63 = vld [vmem:[#allocation2] sm:$0xff]
    %v64 = vld [vmem:[#allocation2 + $0x8] sm:$0xff]
    %v65 = vld [vmem:[#allocation2 + $0x10] sm:$0xff]
    %v66 = vld [vmem:[#allocation2 + $0x18] sm:$0xff]
    %v67 = vld [vmem:[#allocation2 + $0x20] sm:$0xff]
    %v68 = vld [vmem:[#allocation2 + $0x28] sm:$0xff]
    %v69 = vld [vmem:[#allocation2 + $0x30] sm:$0xff]
    %v70 = vld [vmem:[#allocation2 + $0x38] sm:$0xff]
    %v71 = vld [vmem:[#allocation2 + $0x40] sm:$0xff]
    %v72 = vld [vmem:[#allocation2 + $0x48] sm:$0xff]
    %v73 = vld [vmem:[#allocation2 + $0x50] sm:$0xff]
    %v74 = vld [vmem:[#allocation2 + $0x58] sm:$0xff]
    %v75 = vld [vmem:[#allocation2 + $0x60] sm:$0xff]
    %v76 = vld [vmem:[#allocation2 + $0x68] sm:$0xff]
    %v77 = vld [vmem:[#allocation2 + $0x70] sm:$0xff]
    %v78 = vld [vmem:[#allocation2 + $0x78] sm:$0xff]
    %v79 = vld [vmem:[%s4] sm:$0x1]
    %v80 = vld [vmem:[%s4 + $0x1] sm:$0x1]
    %v97 = vcombine.high %v63, %v63
    %v98 = vcombine.high %v64, %v64
    %v99 = vcombine.high %v65, %v65
    %v100 = vcombine.high %v66, %v66
    %v101 = vcombine.high %v67, %v67
    %v102 = vcombine.high %v68, %v68
    %v103 = vcombine.high %v69, %v69
    %v104 = vcombine.high %v70, %v70
    %v105 = vcombine.high %v71, %v71
    %v106 = vcombine.high %v72, %v72
    %v107 = vcombine.high %v73, %v73
    %v108 = vcombine.high %v74, %v74
    %v109 = vcombine.high %v75, %v75
    %v110 = vcombine.high %v76, %v76
    %v111 = vcombine.high %v77, %v77
    %v112 = vcombine.high %v78, %v78
    %vm129 = vcmask 1043456
    %v130 = vsel %vm129, %v63, 0.0
    %v131 = vsel %vm129, %v97, 0.0
    %v132 = vadd.f32 %v130, %v131
    %133 = vadd.xlane.f32.xlu0 %v132
    %v134 = vpop.xlane.xlu0 %133
    %v135 = vsel %vm129, %v64, 0.0
    %v136 = vsel %vm129, %v98, 0.0
    %v137 = vadd.f32 %v135, %v136
    %138 = vadd.xlane.f32.xlu0 %v137
    %v139 = vpop.xlane.xlu0 %138
    %v140 = vsel %vm129, %v65, 0.0
    %v141 = vsel %vm129, %v99, 0.0
    %v142 = vadd.f32 %v140, %v141
    %143 = vadd.xlane.f32.xlu0 %v142
    %v144 = vpop.xlane.xlu0 %143
    %v145 = vsel %vm129, %v66, 0.0
    %v146 = vsel %vm129, %v100, 0.0
    %v147 = vadd.f32 %v145, %v146
    %148 = vadd.xlane.f32.xlu0 %v147
    %v149 = vpop.xlane.xlu0 %148
    %v150 = vsel %vm129, %v67, 0.0
    %v151 = vsel %vm129, %v101, 0.0
    %v152 = vadd.f32 %v150, %v151
    %153 = vadd.xlane.f32.xlu0 %v152
    %v154 = vpop.xlane.xlu0 %153
    %v155 = vsel %vm129, %v68, 0.0
    %v156 = vsel %vm129, %v102, 0.0
    %v157 = vadd.f32 %v155, %v156
    %158 = vadd.xlane.f32.xlu0 %v157
    %v159 = vpop.xlane.xlu0 %158
    %v160 = vsel %vm129, %v69, 0.0
    %v161 = vsel %vm129, %v103, 0.0
    %v162 = vadd.f32 %v160, %v161
    %163 = vadd.xlane.f32.xlu0 %v162
    %v164 = vpop.xlane.xlu0 %163
    %v165 = vsel %vm129, %v70, 0.0
    %v166 = vsel %vm129, %v104, 0.0
    %v167 = vadd.f32 %v165, %v166
    %168 = vadd.xlane.f32.xlu0 %v167
    %v169 = vpop.xlane.xlu0 %168
    %v170 = vsel %vm129, %v71, 0.0
    %v171 = vsel %vm129, %v105, 0.0
    %v172 = vadd.f32 %v170, %v171
    %173 = vadd.xlane.f32.xlu0 %v172
    %v174 = vpop.xlane.xlu0 %173
    %v175 = vsel %vm129, %v72, 0.0
    %v176 = vsel %vm129, %v106, 0.0
    %v177 = vadd.f32 %v175, %v176
    %178 = vadd.xlane.f32.xlu0 %v177
    %v179 = vpop.xlane.xlu0 %178
    %v180 = vsel %vm129, %v73, 0.0
    %v181 = vsel %vm129, %v107, 0.0
    %v182 = vadd.f32 %v180, %v181
    %183 = vadd.xlane.f32.xlu0 %v182
    %v184 = vpop.xlane.xlu0 %183
    %v185 = vsel %vm129, %v74, 0.0
    %v186 = vsel %vm129, %v108, 0.0
    %v187 = vadd.f32 %v185, %v186
    %188 = vadd.xlane.f32.xlu0 %v187
    %v189 = vpop.xlane.xlu0 %188
    %v190 = vsel %vm129, %v75, 0.0
    %v191 = vsel %vm129, %v109, 0.0
    %v192 = vadd.f32 %v190, %v191
    %193 = vadd.xlane.f32.xlu0 %v192
    %v194 = vpop.xlane.xlu0 %193
    %v195 = vsel %vm129, %v76, 0.0
    %v196 = vsel %vm129, %v110, 0.0
    %v197 = vadd.f32 %v195, %v196
    %198 = vadd.xlane.f32.xlu0 %v197
    %v199 = vpop.xlane.xlu0 %198
    %v200 = vsel %vm129, %v77, 0.0
    %v201 = vsel %vm129, %v111, 0.0
    %v202 = vadd.f32 %v200, %v201
    %203 = vadd.xlane.f32.xlu0 %v202
    %v204 = vpop.xlane.xlu0 %203
    %v205 = vsel %vm129, %v78, 0.0
    %v206 = vsel %vm129, %v112, 0.0
    %v207 = vadd.f32 %v205, %v206
    %208 = vadd.xlane.f32.xlu0 %v207
    %v209 = vpop.xlane.xlu0 %208
    %v210 = vpack.c.bf16 %v134, %v134
    %v211 = vpack.c.bf16 %v139, %v139
    %v212 = vpack.c.bf16 %v144, %v144
    %v213 = vpack.c.bf16 %v149, %v149
    %v214 = vpack.c.bf16 %v154, %v154
    %v215 = vpack.c.bf16 %v159, %v159
    %v216 = vpack.c.bf16 %v164, %v164
    %v217 = vpack.c.bf16 %v169, %v169
    %v218 = vpack.c.bf16 %v174, %v174
    %v219 = vpack.c.bf16 %v179, %v179
    %v220 = vpack.c.bf16 %v184, %v184
    %v221 = vpack.c.bf16 %v189, %v189
    %v222 = vpack.c.bf16 %v194, %v194
    %v223 = vpack.c.bf16 %v199, %v199
    %v224 = vpack.c.bf16 %v204, %v204
    %v225 = vpack.c.bf16 %v209, %v209
    %v226 = vld [vmem:[%s1] sm:$0x3]
    %v227 = vlaneseq
    %v228 = vshrl.u32 %v227, 7
    %v229 = vsub.s32 0, %v228
    %v230 = vrot.slane %v79, %v229
    %v247 = vunpack.c.l.b16 %v210
    %v248 = vunpack.c.l.b16 %v211
    %v249 = vunpack.c.l.b16 %v212
    %v250 = vunpack.c.l.b16 %v213
    %v251 = vunpack.c.l.b16 %v214
    %v252 = vunpack.c.l.b16 %v215
    %v253 = vunpack.c.l.b16 %v216
    %v254 = vunpack.c.l.b16 %v217
    %v255 = vunpack.c.l.b16 %v218
    %v256 = vunpack.c.l.b16 %v219
    %v257 = vunpack.c.l.b16 %v220
    %v258 = vunpack.c.l.b16 %v221
    %v259 = vunpack.c.l.b16 %v222
    %v260 = vunpack.c.l.b16 %v223
    %v261 = vunpack.c.l.b16 %v224
    %v262 = vunpack.c.l.b16 %v225
    %v263 = vlaneseq
    %v264 = vand.u32 %v263, 127
    %v265 = vlaneseq
    %v266 = vshrl.u32 %v265, 7
    %v267 = vsub.s32 %v264, %v266
    %v268 = vrot.slane %v247, %v267
    %v269 = vlaneseq
    %v270 = vshrl.u32 %v269, 7
    %v271 = vsub.s32 %v264, %v270
    %v272 = vrot.slane %v248, %v271
    %v273 = vlaneseq
    %v274 = vshrl.u32 %v273, 7
    %v275 = vsub.s32 %v264, %v274
    %v276 = vrot.slane %v249, %v275
    %v277 = vlaneseq
    %v278 = vshrl.u32 %v277, 7
    %v279 = vsub.s32 %v264, %v278
    %v280 = vrot.slane %v250, %v279
    %v281 = vlaneseq
    %v282 = vshrl.u32 %v281, 7
    %v283 = vsub.s32 %v264, %v282
    %v284 = vrot.slane %v251, %v283
    %v285 = vlaneseq
    %v286 = vshrl.u32 %v285, 7
    %v287 = vsub.s32 %v264, %v286
    %v288 = vrot.slane %v252, %v287
    %v289 = vlaneseq
    %v290 = vshrl.u32 %v289, 7
    %v291 = vsub.s32 %v264, %v290
    %v292 = vrot.slane %v253, %v291
    %v293 = vlaneseq
    %v294 = vshrl.u32 %v293, 7
    %v295 = vsub.s32 %v264, %v294
    %v296 = vrot.slane %v254, %v295
    %v297 = vlaneseq
    %v298 = vshrl.u32 %v297, 7
    %v299 = vsub.s32 %v264, %v298
    %v300 = vrot.slane %v255, %v299
    %v301 = vlaneseq
    %v302 = vshrl.u32 %v301, 7
    %v303 = vsub.s32 %v264, %v302
    %v304 = vrot.slane %v256, %v303
    %v305 = vlaneseq
    %v306 = vshrl.u32 %v305, 7
    %v307 = vsub.s32 %v264, %v306
    %v308 = vrot.slane %v257, %v307
    %v309 = vlaneseq
    %v310 = vshrl.u32 %v309, 7
    %v311 = vsub.s32 %v264, %v310
    %v312 = vrot.slane %v258, %v311
    %v313 = vlaneseq
    %v314 = vshrl.u32 %v313, 7
    %v315 = vsub.s32 %v264, %v314
    %v316 = vrot.slane %v259, %v315
    %v317 = vlaneseq
    %v318 = vshrl.u32 %v317, 7
    %v319 = vsub.s32 %v264, %v318
    %v320 = vrot.slane %v260, %v319
    %v321 = vlaneseq
    %v322 = vshrl.u32 %v321, 7
    %v323 = vsub.s32 %v264, %v322
    %v324 = vrot.slane %v261, %v323
    %v325 = vlaneseq
    %v326 = vshrl.u32 %v325, 7
    %v327 = vsub.s32 %v264, %v326
    %v328 = vrot.slane %v262, %v327
    %vm329 = vcmask 1041409
    %v330 = vsel %vm329, %v272, %v268
    %vm331 = vcmask 1042434
    %v332 = vsel %vm331, %v276, %v330
    %vm333 = vcmask 1043459
    %v334 = vsel %vm333, %v280, %v332
    %vm335 = vcmask 1044484
    %v336 = vsel %vm335, %v284, %v334
    %vm337 = vcmask 1045509
    %v338 = vsel %vm337, %v288, %v336
    %vm339 = vcmask 1046534
    %v340 = vsel %vm339, %v292, %v338
    %vm341 = vcmask 1047559
    %v342 = vsel %vm341, %v296, %v340
    %v343 = vsel %vm329, %v304, %v300
    %v344 = vsel %vm331, %v308, %v343
    %v345 = vsel %vm333, %v312, %v344
    %v346 = vsel %vm335, %v316, %v345
    %v347 = vsel %vm337, %v320, %v346
    %v348 = vsel %vm339, %v324, %v347
    %v349 = vsel %vm341, %v328, %v348
    %v350 = vpack.c.b16 %v349, %v342
    %vm351 = vcmask 31744
    %v353 = vsel %vm351, %v350, 0
    %vm355 = vcmask 1041408
    %v357 = vsel %vm355, %v226, 0
    %359 = vmatprep.subr.bf16.mxu0 0
    %360 = vmatpush1.bf16.msra.mxu0 %v357
    %361 = vmatprep.subr.bf16.mxu0 0
    %362 = vmatpush1.bf16.msra.mxu0 0
    %363 = vmatprep.subr.bf16.mxu0 0
    %364 = vmatpush1.bf16.msra.mxu0 0
    %365 = vmatprep.subr.bf16.mxu0 0
    %366 = vmatpush1.bf16.msra.mxu0 0
    %367 = vmatprep.subr.bf16.mxu0 0
    %368 = vmatpush1.bf16.msra.mxu0 0
    %369 = vmatprep.subr.bf16.mxu0 0
    %370 = vmatpush1.bf16.msra.mxu0 0
    %371 = vmatprep.subr.bf16.mxu0 0
    %372 = vmatpush1.bf16.msra.mxu0 0
    %373 = vmatprep.subr.bf16.mxu0 0
    %374 = vmatpush1.bf16.msra.mxu0 0
    %375 = vmatprep.subr.bf16.mxu0 0
    %376 = vmatpush1.bf16.msra.mxu0 0
    %377 = vmatprep.subr.bf16.mxu0 0
    %378 = vmatpush1.bf16.msra.mxu0 0
    %379 = vmatprep.subr.bf16.mxu0 0
    %380 = vmatpush1.bf16.msra.mxu0 0
    %381 = vmatprep.subr.bf16.mxu0 0
    %382 = vmatpush1.bf16.msra.mxu0 0
    %383 = vmatprep.subr.bf16.mxu0 0
    %384 = vmatpush1.bf16.msra.mxu0 0
    %385 = vmatprep.subr.bf16.mxu0 0
    %386 = vmatpush1.bf16.msra.mxu0 0
    %387 = vmatprep.subr.bf16.mxu0 0
    %388 = vmatpush1.bf16.msra.mxu0 0
    %389 = vmatprep.subr.bf16.mxu0 0
    %390 = vmatpush1.bf16.msra.mxu0 0
    %391 = vmatprep.mubr.bf16.mxu0 0
    %392 = vmatmul.mubr.bf16.gmra.mrb[0].mxu0 %v353
    %v393 = vpop.f32.mrb[0].mxu0
    %v394 = vadd.f32 %v230, %v393
    %v395 = vpop.f32.mrb[0].mxu0
    %v396 = vpop.f32.mrb[0].mxu0
    %v397 = vadd.f32 %v230, %v396
    %v398 = vpop.f32.mrb[0].mxu0
    %399 = vdwg.mxu0
    %vm400 = vcmp.ge.f32.partialorder %v394, 0.0
    %vm401 = vcmp.ge.f32.partialorder %v397, 0.0
    %v402 = vmul.f32 %v394, 0.01
    %v403 = vmul.f32 %v397, 0.01
    %v404 = vsel %vm400, %v394, %v402
    %v405 = vsel %vm401, %v397, %v403
    %v406 = vpack.c.bf16 %v405, %v404
    %v407 = vld [vmem:[#allocation5] sm:$0xf]
    %v408 = vld [vmem:[#allocation5 + $0x4] sm:$0xf]
    %v409 = vld [vmem:[#allocation5 + $0x8] sm:$0xf]
    %v410 = vld [vmem:[#allocation5 + $0xc] sm:$0xf]
    %v411 = vld [vmem:[#allocation5 + $0x10] sm:$0xf]
    %v412 = vld [vmem:[#allocation5 + $0x14] sm:$0xf]
    %v413 = vld [vmem:[#allocation5 + $0x18] sm:$0xf]
    %v414 = vld [vmem:[#allocation5 + $0x1c] sm:$0xf]
    %v415 = vld [vmem:[#allocation5 + $0x20] sm:$0xf]
    %v416 = vld [vmem:[#allocation5 + $0x24] sm:$0xf]
    %v417 = vld [vmem:[#allocation5 + $0x28] sm:$0xf]
    %v418 = vld [vmem:[#allocation5 + $0x2c] sm:$0xf]
    %v419 = vld [vmem:[#allocation5 + $0x30] sm:$0xf]
    %v420 = vld [vmem:[#allocation5 + $0x34] sm:$0xf]
    %v421 = vld [vmem:[#allocation5 + $0x38] sm:$0xf]
    %v422 = vld [vmem:[#allocation5 + $0x3c] sm:$0xf]
    %v423 = vlaneseq
    %v424 = vshrl.u32 %v423, 7
    %v425 = vsub.s32 0, %v424
    %v426 = vrot.slane %v80, %v425
    %v443 = vunpack.c.l.b16 %v407
    %v444 = vunpack.c.l.b16 %v408
    %v445 = vunpack.c.l.b16 %v409
    %v446 = vunpack.c.l.b16 %v410
    %v447 = vunpack.c.l.b16 %v411
    %v448 = vunpack.c.l.b16 %v412
    %v449 = vunpack.c.l.b16 %v413
    %v450 = vunpack.c.l.b16 %v414
    %v451 = vunpack.c.l.b16 %v415
    %v452 = vunpack.c.l.b16 %v416
    %v453 = vunpack.c.l.b16 %v417
    %v454 = vunpack.c.l.b16 %v418
    %v455 = vunpack.c.l.b16 %v419
    %v456 = vunpack.c.l.b16 %v420
    %v457 = vunpack.c.l.b16 %v421
    %v458 = vunpack.c.l.b16 %v422
    %v459 = vpack.c.b16 %v444, %v443
    %v460 = vpack.c.b16 %v446, %v445
    %v461 = vpack.c.b16 %v448, %v447
    %v462 = vpack.c.b16 %v450, %v449
    %v463 = vpack.c.b16 %v452, %v451
    %v464 = vpack.c.b16 %v454, %v453
    %v465 = vpack.c.b16 %v456, %v455
    %v466 = vpack.c.b16 %v458, %v457
    %475 = vmatprep.subr.bf16.mxu0 0
    %476 = vmatpush1.bf16.msra.mxu0 %v459
    %477 = vmatprep.subr.bf16.mxu0 0
    %478 = vmatpush1.bf16.msra.mxu0 %v460
    %479 = vmatprep.subr.bf16.mxu0 0
    %480 = vmatpush1.bf16.msra.mxu0 %v461
    %481 = vmatprep.subr.bf16.mxu0 0
    %482 = vmatpush1.bf16.msra.mxu0 %v462
    %483 = vmatprep.subr.bf16.mxu0 0
    %484 = vmatpush1.bf16.msra.mxu0 %v463
    %485 = vmatprep.subr.bf16.mxu0 0
    %486 = vmatpush1.bf16.msra.mxu0 %v464
    %487 = vmatprep.subr.bf16.mxu0 0
    %488 = vmatpush1.bf16.msra.mxu0 %v465
    %489 = vmatprep.subr.bf16.mxu0 0
    %490 = vmatpush1.bf16.msra.mxu0 %v466
    %491 = vmatprep.subr.bf16.mxu0 0
    %492 = vmatpush1.bf16.msra.mxu0 0
    %493 = vmatprep.subr.bf16.mxu0 0
    %494 = vmatpush1.bf16.msra.mxu0 0
    %495 = vmatprep.subr.bf16.mxu0 0
    %496 = vmatpush1.bf16.msra.mxu0 0
    %497 = vmatprep.subr.bf16.mxu0 0
    %498 = vmatpush1.bf16.msra.mxu0 0
    %499 = vmatprep.subr.bf16.mxu0 0
    %500 = vmatpush1.bf16.msra.mxu0 0
    %501 = vmatprep.subr.bf16.mxu0 0
    %502 = vmatpush1.bf16.msra.mxu0 0
    %503 = vmatprep.subr.bf16.mxu0 0
    %504 = vmatpush1.bf16.msra.mxu0 0
    %505 = vmatprep.subr.bf16.mxu0 0
    %506 = vmatpush1.bf16.msra.mxu0 0
    %507 = vmatprep.mubr.bf16.mxu0 0
    %508 = vmatmul.mubr.bf16.gmra.mrb[0].mxu0 %v406
    %v509 = vpop.f32.mrb[0].mxu0
    %v510 = vadd.f32 %v426, %v509
    %v511 = vpop.f32.mrb[0].mxu0
    %v512 = vpop.f32.mrb[0].mxu0
    %v513 = vadd.f32 %v426, %v512
    %v514 = vpop.f32.mrb[0].mxu0
    %515 = vdwg.mxu0
    %vm516 = vcmp.lt.s32.totalorder %v264, 55
    %vm517 = vcmp.ge.s32.totalorder %v264, 55
    %vm518 = vcmp.lt.s32.totalorder %v264, 87
    %vm519 = vmand %vm517, %vm518
    %v520 = vsel %vm516, %v510, -inf
    %v521 = vsel %vm516, %v513, -inf
    %522 = vmax.xlane.f32.xlu0 %v520
    %v523 = vpop.xlane.xlu0 %522
    %524 = vmax.xlane.f32.xlu0 %v521
    %v525 = vpop.xlane.xlu0 %524
    %v526 = vsub.f32 %v510, %v523
    %v527 = vsub.f32 %v513, %v525
    %v528 = vmul.f32 %v526, 1.442695
    %v529 = vpow.pop %v528
    %v530 = vmul.f32 %v527, 1.442695
    %v531 = vpow.pop %v530
    %v532 = vsel %vm516, %v529, 0.0
    %v533 = vsel %vm516, %v531, 0.0
    %534 = vadd.xlane.f32.xlu0 %v532
    %v535 = vpop.xlane.xlu0 %534
    %536 = vadd.xlane.f32.xlu0 %v533
    %v537 = vpop.xlane.xlu0 %536
    %v538 = vrcp.pop %v535
    %v539 = vrcp.pop %v537
    %v540 = vmul.f32 %v532, %v538
    %v541 = vmul.f32 %v533, %v539
    %v542 = vpack.c.bf16 %v541, %v540
    %v543 = vld [vmem:[#allocation7] sm:$0xf]
    %v544 = vld [vmem:[#allocation7 + $0x4] sm:$0xf]
    %v545 = vld [vmem:[#allocation7 + $0x8] sm:$0xf]
    %v546 = vld [vmem:[#allocation7 + $0xc] sm:$0xf]
    %v547 = vld [vmem:[#allocation7 + $0x10] sm:$0xf]
    %v548 = vld [vmem:[#allocation7 + $0x14] sm:$0xf]
    %v549 = vld [vmem:[#allocation7 + $0x18] sm:$0xf]
    %v550 = vld [vmem:[#allocation7 + $0x1c] sm:$0xf]
    %v551 = vld [vmem:[#allocation7 + $0x20] sm:$0xf]
    %v552 = vld [vmem:[#allocation7 + $0x24] sm:$0xf]
    %v553 = vld [vmem:[#allocation7 + $0x28] sm:$0xf]
    %v554 = vld [vmem:[#allocation7 + $0x2c] sm:$0xf]
    %v555 = vld [vmem:[#allocation7 + $0x30] sm:$0xf]
    %v556 = vld [vmem:[#allocation7 + $0x34] sm:$0xf]
    %v557 = vld [vmem:[#allocation7 + $0x38] sm:$0xf]
    %v558 = vld [vmem:[#allocation7 + $0x3c] sm:$0xf]
    %v575 = vunpack.c.l.b16 %v543
    %v576 = vunpack.c.l.b16 %v544
    %v577 = vunpack.c.l.b16 %v545
    %v578 = vunpack.c.l.b16 %v546
    %v579 = vunpack.c.l.b16 %v547
    %v580 = vunpack.c.l.b16 %v548
    %v581 = vunpack.c.l.b16 %v549
    %v582 = vunpack.c.l.b16 %v550
    %v583 = vunpack.c.l.b16 %v551
    %v584 = vunpack.c.l.b16 %v552
    %v585 = vunpack.c.l.b16 %v553
    %v586 = vunpack.c.l.b16 %v554
    %v587 = vunpack.c.l.b16 %v555
    %v588 = vunpack.c.l.b16 %v556
    %v589 = vunpack.c.l.b16 %v557
    %v590 = vunpack.c.l.b16 %v558
    %v591 = vpack.c.b16 %v576, %v575
    %v592 = vpack.c.b16 %v578, %v577
    %v593 = vpack.c.b16 %v580, %v579
    %v594 = vpack.c.b16 %v582, %v581
    %v595 = vpack.c.b16 %v584, %v583
    %v596 = vpack.c.b16 %v586, %v585
    %v597 = vpack.c.b16 %v588, %v587
    %v598 = vpack.c.b16 %v590, %v589
    %607 = vmatprep.subr.bf16.mxu0 0
    %608 = vmatpush1.bf16.msra.mxu0 %v591
    %609 = vmatprep.subr.bf16.mxu0 0
    %610 = vmatpush1.bf16.msra.mxu0 %v592
    %611 = vmatprep.subr.bf16.mxu0 0
    %612 = vmatpush1.bf16.msra.mxu0 %v593
    %613 = vmatprep.subr.bf16.mxu0 0
    %614 = vmatpush1.bf16.msra.mxu0 %v594
    %615 = vmatprep.subr.bf16.mxu0 0
    %616 = vmatpush1.bf16.msra.mxu0 %v595
    %617 = vmatprep.subr.bf16.mxu0 0
    %618 = vmatpush1.bf16.msra.mxu0 %v596
    %619 = vmatprep.subr.bf16.mxu0 0
    %620 = vmatpush1.bf16.msra.mxu0 %v597
    %621 = vmatprep.subr.bf16.mxu0 0
    %622 = vmatpush1.bf16.msra.mxu0 %v598
    %623 = vmatprep.subr.bf16.mxu0 0
    %624 = vmatpush1.bf16.msra.mxu0 0
    %625 = vmatprep.subr.bf16.mxu0 0
    %626 = vmatpush1.bf16.msra.mxu0 0
    %627 = vmatprep.subr.bf16.mxu0 0
    %628 = vmatpush1.bf16.msra.mxu0 0
    %629 = vmatprep.subr.bf16.mxu0 0
    %630 = vmatpush1.bf16.msra.mxu0 0
    %631 = vmatprep.subr.bf16.mxu0 0
    %632 = vmatpush1.bf16.msra.mxu0 0
    %633 = vmatprep.subr.bf16.mxu0 0
    %634 = vmatpush1.bf16.msra.mxu0 0
    %635 = vmatprep.subr.bf16.mxu0 0
    %636 = vmatpush1.bf16.msra.mxu0 0
    %637 = vmatprep.subr.bf16.mxu0 0
    %638 = vmatpush1.bf16.msra.mxu0 0
    %639 = vmatprep.mubr.bf16.mxu0 0
    %640 = vmatmul.mubr.bf16.gmra.mrb[0].mxu0 %v542
    %v641 = vpop.f32.mrb[0].mxu0
    %v642 = vadd.f32 0.0, %v641
    %v643 = vpop.f32.mrb[0].mxu0
    %v644 = vpop.f32.mrb[0].mxu0
    %v645 = vadd.f32 0.0, %v644
    %v646 = vpop.f32.mrb[0].mxu0
    %647 = vdwg.mxu0
    %v648 = vadd.f32 %v510, %v642
    %v649 = vadd.f32 %v513, %v645
    %v650 = vsel %vm519, %v648, -inf
    %v651 = vsel %vm519, %v649, -inf
    %652 = vmax.xlane.f32.xlu0 %v650
    %v653 = vpop.xlane.xlu0 %652
    %654 = vmax.xlane.f32.xlu0 %v651
    %v655 = vpop.xlane.xlu0 %654
    %v656 = vsub.f32 %v648, %v653
    %v657 = vsub.f32 %v649, %v655
    %v658 = vmul.f32 %v656, 1.442695
    %v659 = vpow.pop %v658
    %v660 = vmul.f32 %v657, 1.442695
    %v661 = vpow.pop %v660
    %v662 = vsel %vm519, %v659, 0.0
    %v663 = vsel %vm519, %v661, 0.0
    %664 = vadd.xlane.f32.xlu0 %v662
    %v665 = vpop.xlane.xlu0 %664
    %666 = vadd.xlane.f32.xlu0 %v663
    %v667 = vpop.xlane.xlu0 %666
    %v668 = vrcp.pop %v665
    %v669 = vrcp.pop %v667
    %v670 = vmul.f32 %v662, %v668
    %v671 = vmul.f32 %v663, %v669
    %v672 = vadd.f32 %v540, %v670
    %v673 = vadd.f32 %v541, %v671
    %674 = vst [vmem:[#allocation8] sm:$0xff] %v672
    %675 = vst [vmem:[#allocation8 + $0x8] sm:$0xff] %v673
    // Predicated region
    $region34: #{tpu_custom_call.1} parent=1 // pred_check
      _
    $region35: #{tpu_custom_call.1} parent=1 // pred_check_branch
      %677 = sbr.rel (0) target = $region37
    $region36: #{tpu_custom_call.1} parent=1 // pred_region
      %s679 = ssub.s32 256, 256
      %680 = vsyncadd [#allocation4], %s679
      %s681 = sshll.u32 [#allocation8], 4
      %s682 = int_to_ptr.vmem [resolvable:$true] %s681
      %687 = dma.vmem_to_hbm [thread:$0]  %s682, 256, %s5, [#allocation4], 128, 128, 8
    $region37: #{tpu_custom_call.1} parent=1 // pred_fallthru
      _
    // Predicated region
    $region38: #{tpu_custom_call.1} parent=1 // pred_check
      _
    $region39: #{tpu_custom_call.1} parent=1 // pred_check_branch
      %689 = sbr.rel (0) target = $region41
    $region40: #{tpu_custom_call.1} parent=1 // pred_region
      %690 = dma.done [#allocation4], 256
    $region41: #{tpu_custom_call.1} parent=1 // pred_fallthru
      _
    %691 = vsyncpa [#allocation3], 1
    %692 = vsyncpa [#allocation6], 1
    %693 = vsyncpa [#allocation4], 1

</llo_original>
